<compile_context>
chip_gen: v5e
topology: v5e:2x2
jax: 0.10.0
libtpu: 0.0.40
codegen_flags: <defaults>
</compile_context>

<pallas_src>
import functools

import jax
import jax.numpy as jnp
from jax import lax
from jax.experimental import pallas as pl
from jax.experimental.pallas import tpu as pltpu


def _caa_kernel(x_ref, w12_ref, b12_ref, out_ref, *, B, Cin, C1, C2, HW):
    # x_ref   : (Cin, B*HW)      input, batch concatenated along the lane axis
    # w12_ref : (C2+C1, Cin)     fused [conv2.weight; conv1.weight]  (C2 first)
    # b12_ref : (C2+C1, 1)       fused [conv2.bias;   conv1.bias]
    # out_ref : (B, Cin+C1, HW)  == concat([x, attn_out], channel axis)
    x_all = x_ref[...].astype(jnp.float32)          # (Cin, B*HW)
    w12 = w12_ref[...].astype(jnp.float32)          # (C2+C1, Cin)
    b12 = b12_ref[...].astype(jnp.float32)          # (C2+C1, 1)

    # Single batched MXU pass for both 1x1 convs across the whole batch.
    # Bias broadcast/add happens once (outside the per-batch loop).
    x12 = jnp.dot(w12, x_all, preferred_element_type=jnp.float32) + b12  # (C2+C1, B*HW)

    # C2 first => both slices are tile-aligned free views:
    #   x2_all = sublanes [0, C2)      (full (8, *) tile when C2 == 8)
    #   x1_all = sublanes [C2, C2+C1)  (starts at sublane 8)
    x2_all = x12[:C2]                               # (C2, B*HW)
    x1_all = x12[C2:]                               # (C1, B*HW)

    # B is tiny (2): static unrolled loop; lane offsets b*HW are multiples of
    # 128 so the column slices below are aligned views.
    for b in range(B):
        lo = b * HW
        xb = x_all[:, lo:lo + HW]                   # (Cin, HW)
        x1b = x1_all[:, lo:lo + HW]                 # (C1, HW)
        x2b = x2_all[:, lo:lo + HW]                 # (C2, HW)

        # scores[i, j] = sum_hw x1b[i, hw] * x2b[j, hw]  -> (C1, C2)
        scores = lax.dot_general(
            x1b, x2b, (((1,), (1,)), ((), ())),
            preferred_element_type=jnp.float32)

        # Exact softmax over the class axis (tiny tile; keep exact divide).
        m = jnp.max(scores, axis=-1, keepdims=True)
        e = jnp.exp(scores - m)
        attn = e / jnp.sum(e, axis=-1, keepdims=True)    # (C1, C2)

        # Weighted combination of class maps: (C1, C2) @ (C2, HW) -> (C1, HW)
        agg = jnp.dot(attn, x2b, preferred_element_type=jnp.float32)

        # In-kernel concat: [x | attention output] -> one dense (Cin+C1, HW)
        # slab, stored as full (8, 128)-aligned unmasked vregs.
        out_ref[b] = jnp.concatenate([xb, agg], axis=0).astype(out_ref.dtype)


def caa_forward(x, w1, b1, w2, b2):
    """x: (B, Cin, H, W) NCHW float32. Returns (B, Cin + C1, H, W)."""
    B, Cin, H, W = x.shape
    HW = H * W
    C1 = w1.shape[0]
    C2 = w2.shape[0]

    # Layout plumbing: (B, Cin, HW) -> (Cin, B*HW) so the fused conv is one
    # wide MXU pass inside the kernel.
    x_all = jnp.transpose(x.reshape(B, Cin, HW), (1, 0, 2)).reshape(Cin, B * HW)

    # Fuse the two conv weights / biases, C2 FIRST so the in-kernel split is
    # 8-sublane aligned (tiny constants; concatenated once on the host side).
    w12 = jnp.concatenate([w2, w1], axis=0)                       # (C2+C1, Cin)
    b12 = jnp.concatenate([b2, b1], axis=0).reshape(C1 + C2, 1)   # (C2+C1, 1)

    kernel = functools.partial(_caa_kernel, B=B, Cin=Cin, C1=C1, C2=C2, HW=HW)

    # Single invocation, no grid: whole arrays live in VMEM (<100 KB total),
    # no pipeline machinery, no per-step overhead.
    out = pl.pallas_call(
        kernel,
        out_shape=jax.ShapeDtypeStruct((B, Cin + C1, HW), x.dtype),
        in_specs=[
            pl.BlockSpec(memory_space=pltpu.MemorySpace.VMEM),
            pl.BlockSpec(memory_space=pltpu.MemorySpace.VMEM),
            pl.BlockSpec(memory_space=pltpu.MemorySpace.VMEM),
        ],
        out_specs=pl.BlockSpec(memory_space=pltpu.MemorySpace.VMEM),
    )(x_all, w12, b12)

    return out.reshape(B, Cin + C1, H, W)


def caa_reference(x, w1, b1, w2, b2):
    """Pure-JAX reference matching the PyTorch forward."""
    B, Cin, H, W = x.shape
    C1 = w1.shape[0]
    C2 = w2.shape[0]
    x1 = jnp.einsum("bchw,oc->bohw", x, w1) + b1[None, :, None, None]
    x2 = jnp.einsum("bchw,oc->bohw", x, w2) + b2[None, :, None, None]
    x1 = x1.reshape(B, C1, H * W)
    x2 = x2.reshape(B, C2, H * W)
    attn = jax.nn.softmax(jnp.einsum("bij,bkj->bik", x1, x2), axis=-1)
    out = jnp.einsum("bik,bkj->bij", attn, x2).reshape(B, C1, H, W)
    return jnp.concatenate([x, out], axis=1)


if __name__ == "__main__":
    # Small shapes consistent with the module: in_channels=4, out_channels=4,
    # num_class=8, spatial 16x16, batch 2.
    B, Cin, H, W = 2, 4, 16, 16
    C1, C2 = 4, 8   # out_channels, num_class

    key = jax.random.PRNGKey(0)
    kx, kw1, kb1, kw2, kb2 = jax.random.split(key, 5)
    x = jax.random.normal(kx, (B, Cin, H, W), dtype=jnp.float32)
    w1 = jax.random.normal(kw1, (C1, Cin), dtype=jnp.float32) * 0.1
    b1 = jax.random.normal(kb1, (C1,), dtype=jnp.float32) * 0.1
    w2 = jax.random.normal(kw2, (C2, Cin), dtype=jnp.float32) * 0.1
    b2 = jax.random.normal(kb2, (C2,), dtype=jnp.float32) * 0.1

    out = caa_forward(x, w1, b1, w2, b2)
    out = jax.block_until_ready(out)

    ref = caa_reference(x, w1, b1, w2, b2)
    assert out.shape == (B, Cin + C1, H, W), out.shape
    assert jnp.allclose(out, ref, atol=1e-5, rtol=1e-5), "mismatch vs reference"

    print("KERNEL_OK")
</pallas_src>

<mosaic_0001>
module attributes {stable_mosaic.version = 11 : i64} {
  func.func @_caa_kernel(%arg0: memref<4x512xf32, #tpu.memory_space<vmem>>, %arg1: memref<12x4xf32, #tpu.memory_space<vmem>>, %arg2: memref<12x1xf32, #tpu.memory_space<vmem>>, %arg3: memref<2x8x256xf32, #tpu.memory_space<vmem>>) attributes {dimension_semantics = [], scalar_prefetch = 0 : i64, scratch_operands = 0 : i64, tpu.core_type = #tpu.core_type<tc>} {
    %c0 = arith.constant 0 : index
    %c0_0 = arith.constant 0 : index
    %0 = vector.load %arg0[%c0, %c0_0] : memref<4x512xf32, #tpu.memory_space<vmem>>, vector<4x512xf32>
    %c0_1 = arith.constant 0 : index
    %c0_2 = arith.constant 0 : index
    %1 = vector.load %arg1[%c0_1, %c0_2] : memref<12x4xf32, #tpu.memory_space<vmem>>, vector<12x4xf32>
    %c0_3 = arith.constant 0 : index
    %c0_4 = arith.constant 0 : index
    %2 = vector.load %arg2[%c0_3, %c0_4] : memref<12x1xf32, #tpu.memory_space<vmem>>, vector<12x1xf32>
    %cst = arith.constant dense<0.000000e+00> : vector<12x512xf32>
    %3 = tpu.matmul %1, %0, %cst {dimension_numbers = #tpu.dot_dimension_numbers<[1], [0], [0], [1], [0, 0, 1, 1], [], []>} : vector<12x4xf32>, vector<4x512xf32>, vector<12x512xf32> -> vector<12x512xf32>
    %4 = vector.broadcast %2 : vector<12x1xf32> to vector<12x512xf32>
    %5 = arith.addf %3, %4 : vector<12x512xf32>
    %6 = vector.extract_strided_slice %5 {offsets = [0, 0], sizes = [8, 512], strides = [1, 1]} : vector<12x512xf32> to vector<8x512xf32>
    %7 = vector.extract_strided_slice %5 {offsets = [8, 0], sizes = [4, 512], strides = [1, 1]} : vector<12x512xf32> to vector<4x512xf32>
    %8 = vector.extract_strided_slice %0 {offsets = [0, 0], sizes = [4, 256], strides = [1, 1]} : vector<4x512xf32> to vector<4x256xf32>
    %9 = vector.extract_strided_slice %7 {offsets = [0, 0], sizes = [4, 256], strides = [1, 1]} : vector<4x512xf32> to vector<4x256xf32>
    %10 = vector.extract_strided_slice %6 {offsets = [0, 0], sizes = [8, 256], strides = [1, 1]} : vector<8x512xf32> to vector<8x256xf32>
    %cst_5 = arith.constant dense<0.000000e+00> : vector<4x8xf32>
    %11 = tpu.matmul %9, %10, %cst_5 {dimension_numbers = #tpu.dot_dimension_numbers<[1], [1], [0], [0], [0, 0, 1, 0], [], []>} : vector<4x256xf32>, vector<8x256xf32>, vector<4x8xf32> -> vector<4x8xf32>
    %cst_6 = arith.constant dense<0xFF800000> : vector<4xf32>
    %12 = vector.multi_reduction <maximumf>, %11, %cst_6 [1] : vector<4x8xf32> to vector<4xf32>
    %13 = vector.shape_cast %12 : vector<4xf32> to vector<4x1xf32>
    %14 = vector.broadcast %13 : vector<4x1xf32> to vector<4x8xf32>
    %15 = arith.subf %11, %14 : vector<4x8xf32>
    %16 = math.exp %15 : vector<4x8xf32>
    %cst_7 = arith.constant dense<0.000000e+00> : vector<4xf32>
    %17 = vector.multi_reduction <add>, %16, %cst_7 [1] : vector<4x8xf32> to vector<4xf32>
    %18 = vector.shape_cast %17 : vector<4xf32> to vector<4x1xf32>
    %19 = vector.broadcast %18 : vector<4x1xf32> to vector<4x8xf32>
    %20 = arith.divf %16, %19 : vector<4x8xf32>
    %cst_8 = arith.constant dense<0.000000e+00> : vector<4x256xf32>
    %21 = tpu.matmul %20, %10, %cst_8 {dimension_numbers = #tpu.dot_dimension_numbers<[1], [0], [0], [1], [0, 0, 1, 1], [], []>} : vector<4x8xf32>, vector<8x256xf32>, vector<4x256xf32> -> vector<4x256xf32>
    %22 = tpu.concatenate %8, %21 in 0 : vector<4x256xf32>, vector<4x256xf32> -> vector<8x256xf32>
    %c0_9 = arith.constant 0 : index
    %c0_10 = arith.constant 0 : index
    %c0_11 = arith.constant 0 : index
    %23 = vector.load %arg3[%c0_9, %c0_10, %c0_11] : memref<2x8x256xf32, #tpu.memory_space<vmem>>, vector<1x8x256xf32>
    %24 = vector.shape_cast %23 : vector<1x8x256xf32> to vector<8x256xf32>
    %25 = vector.shape_cast %22 : vector<8x256xf32> to vector<1x8x256xf32>
    tpu.vector_store %arg3[%c0_9, %c0_10, %c0_11], %25 {strides = array<i32>} : memref<2x8x256xf32, #tpu.memory_space<vmem>>, vector<1x8x256xf32>,
    %26 = vector.extract_strided_slice %0 {offsets = [0, 256], sizes = [4, 256], strides = [1, 1]} : vector<4x512xf32> to vector<4x256xf32>
    %27 = vector.extract_strided_slice %7 {offsets = [0, 256], sizes = [4, 256], strides = [1, 1]} : vector<4x512xf32> to vector<4x256xf32>
    %28 = vector.extract_strided_slice %6 {offsets = [0, 256], sizes = [8, 256], strides = [1, 1]} : vector<8x512xf32> to vector<8x256xf32>
    %cst_12 = arith.constant dense<0.000000e+00> : vector<4x8xf32>
    %29 = tpu.matmul %27, %28, %cst_12 {dimension_numbers = #tpu.dot_dimension_numbers<[1], [1], [0], [0], [0, 0, 1, 0], [], []>} : vector<4x256xf32>, vector<8x256xf32>, vector<4x8xf32> -> vector<4x8xf32>
    %cst_13 = arith.constant dense<0xFF800000> : vector<4xf32>
    %30 = vector.multi_reduction <maximumf>, %29, %cst_13 [1] : vector<4x8xf32> to vector<4xf32>
    %31 = vector.shape_cast %30 : vector<4xf32> to vector<4x1xf32>
    %32 = vector.broadcast %31 : vector<4x1xf32> to vector<4x8xf32>
    %33 = arith.subf %29, %32 : vector<4x8xf32>
    %34 = math.exp %33 : vector<4x8xf32>
    %cst_14 = arith.constant dense<0.000000e+00> : vector<4xf32>
    %35 = vector.multi_reduction <add>, %34, %cst_14 [1] : vector<4x8xf32> to vector<4xf32>
    %36 = vector.shape_cast %35 : vector<4xf32> to vector<4x1xf32>
    %37 = vector.broadcast %36 : vector<4x1xf32> to vector<4x8xf32>
    %38 = arith.divf %34, %37 : vector<4x8xf32>
    %cst_15 = arith.constant dense<0.000000e+00> : vector<4x256xf32>
    %39 = tpu.matmul %38, %28, %cst_15 {dimension_numbers = #tpu.dot_dimension_numbers<[1], [0], [0], [1], [0, 0, 1, 1], [], []>} : vector<4x8xf32>, vector<8x256xf32>, vector<4x256xf32> -> vector<4x256xf32>
    %40 = tpu.concatenate %26, %39 in 0 : vector<4x256xf32>, vector<4x256xf32> -> vector<8x256xf32>
    %c1 = arith.constant 1 : index
    %c0_16 = arith.constant 0 : index
    %c0_17 = arith.constant 0 : index
    %41 = vector.load %arg3[%c1, %c0_16, %c0_17] : memref<2x8x256xf32, #tpu.memory_space<vmem>>, vector<1x8x256xf32>
    %42 = vector.shape_cast %41 : vector<1x8x256xf32> to vector<8x256xf32>
    %43 = vector.shape_cast %40 : vector<8x256xf32> to vector<1x8x256xf32>
    tpu.vector_store %arg3[%c1, %c0_16, %c0_17], %43 {strides = array<i32>} : memref<2x8x256xf32, #tpu.memory_space<vmem>>, vector<1x8x256xf32>,
    return
  }
}

</mosaic_0001>

<llo_original>
// kernel: tpu_custom_call.1
$region0: #{tpu_custom_call.1}
  #allocation0 [shape = 'u32[]', space=smem, size = 0x4, offset = 0x4, fixed_abs, tag = 'smem constant byte address 0x4 - core index']
  #allocation1 [shape = 'u32[72,128]{1,0:T(1,128)}', space=vmem, size = 0x9000, scoped, tag = 'internal scratch']
  %s0 = inlined_call_operand.vmem [shape: f32[4,512], index: 0, kind: input, shape index: {}]
  %s1 = inlined_call_operand.vmem [shape: f32[12,4], index: 1, kind: input, shape index: {}]
  %s2 = inlined_call_operand.vmem [shape: f32[12,1], index: 2, kind: input, shape index: {}]
  %s3 = inlined_call_operand.hbm [shape: f32[2,8,256], index: 3, kind: output, shape index: {}]
  %s4 = sld [smem:[#allocation0]]
  $region22: #{tpu_custom_call.1} parent=0
    _
  %s6 = ssub.s32 1, %s4
  %s7 = scalar_select 0, %s6, %s4
  $region1: #{tpu_custom_call.1} parent=0
    #allocation2 [shape = 'u8[16384]{0}', space=vmem, size = 0x4000, scoped, tag = 'output window, operand 0, single buffered']
    #allocation3 [shape = 's32[1]{0}', space=sflag, size = 0x4, scoped, tag = 'scoped memory for tpu_custom_call.1']
    %8 = vsyncpa [#allocation3], 0
    // Predicated region
    $region2: #{tpu_custom_call.1} parent=1 // pred_check
      _
    $region3: #{tpu_custom_call.1} parent=1 // pred_check_branch
      %10 = sbr.rel (0) target = $region5
    $region4: #{tpu_custom_call.1} parent=1 // pred_region
      _
    $region5: #{tpu_custom_call.1} parent=1 // pred_fallthru
      _
    // Predicated region
    $region6: #{tpu_custom_call.1} parent=1 // pred_check
      _
    $region7: #{tpu_custom_call.1} parent=1 // pred_check_branch
      %12 = sbr.rel (0) target = $region9
    $region8: #{tpu_custom_call.1} parent=1 // pred_region
      _
    $region9: #{tpu_custom_call.1} parent=1 // pred_fallthru
      _
    // Predicated region
    $region10: #{tpu_custom_call.1} parent=1 // pred_check
      _
    $region11: #{tpu_custom_call.1} parent=1 // pred_check_branch
      %14 = sbr.rel (0) target = $region13
    $region12: #{tpu_custom_call.1} parent=1 // pred_region
      _
    $region13: #{tpu_custom_call.1} parent=1 // pred_fallthru
      _
    %v15 = vld [vmem:[%s0] sm:$0xff]
    %v16 = vld [vmem:[%s0 + $0x8] sm:$0xff]
    %v17 = vld [vmem:[%s1] sm:$0xff]
    %v18 = vld [vmem:[%s1 + $0x8] sm:$0xf]
    %v19 = vld [vmem:[%s2] sm:$0xff]
    %v20 = vld [vmem:[%s2 + $0x8] sm:$0xf]
    %22 = vset.pattern.permute.xlu0 0
    %23 = vperm.xlu0 %22, %v19
    %v24 = vpop.permute.xlu0 %23
    %27 = vset.pattern.permute.xlu0 0
    %28 = vperm.xlu0 %27, %v20
    %v29 = vpop.permute.xlu0 %28
    %33 = vst [vmem:[#allocation1] ss:$2 sm:$0xff] %v15
    %s34 = scalar_lea.vmem [#allocation1], 16
    %35 = vst [vmem:[%s34] ss:$2 sm:$0xff] %v16
    %v36 = vld.sshfl [vmem:[#allocation1] sm:$0xff pattern:$0x75316420]
    %v37 = vld.sshfl [vmem:[#allocation1 + $0x8] sm:$0xff pattern:$0x75316420]
    %v38 = vld.sshfl [vmem:[#allocation1 + $0x10] sm:$0xff pattern:$0x75316420]
    %v39 = vld.sshfl [vmem:[#allocation1 + $0x18] sm:$0xff pattern:$0x75316420]
    %vm40 = vcmask 31744
    %v42 = vsel %vm40, %v17, 0
    %v45 = vsel %vm40, %v18, 0
    %vm47 = vcmask 1043456
    %v48 = vsel %vm47, %v36, 0
    %v50 = vsel %vm47, %v37, 0
    %v52 = vsel %vm47, %v38, 0
    %v54 = vsel %vm47, %v39, 0
    %56 = vmatpush.msra.mxu0 0.0
    %57 = vmatpush.msra.mxu0 0.0
    %58 = vmatpush.msra.mxu0 0.0
    %59 = vmatpush.msra.mxu0 0.0
    %60 = vmatpush.msra.mxu0 0.0
    %61 = vmatpush.msra.mxu0 0.0
    %62 = vmatpush.msra.mxu0 0.0
    %63 = vmatpush.msra.mxu0 0.0
    %64 = vmatpush.msra.mxu0 0.0
    %65 = vmatpush.msra.mxu0 0.0
    %66 = vmatpush.msra.mxu0 0.0
    %67 = vmatpush.msra.mxu0 0.0
    %68 = vmatpush.msra.mxu0 0.0
    %69 = vmatpush.msra.mxu0 0.0
    %70 = vmatpush.msra.mxu0 0.0
    %71 = vmatpush.msra.mxu0 %v48
    %72 = vmatmul.f32.gmra.mxu0 %v42
    %v73 = vpop.f32.mrf.mxu0
    %v74 = vadd.f32 %v24, %v73
    %75 = vmatmul.f32.gmra.mxu0 %v45
    %v76 = vpop.f32.mrf.mxu0
    %v77 = vadd.f32 %v29, %v76
    %78 = vdwg.mxu0
    %79 = vmatpush.msra.mxu0 0.0
    %80 = vmatpush.msra.mxu0 0.0
    %81 = vmatpush.msra.mxu0 0.0
    %82 = vmatpush.msra.mxu0 0.0
    %83 = vmatpush.msra.mxu0 0.0
    %84 = vmatpush.msra.mxu0 0.0
    %85 = vmatpush.msra.mxu0 0.0
    %86 = vmatpush.msra.mxu0 0.0
    %87 = vmatpush.msra.mxu0 0.0
    %88 = vmatpush.msra.mxu0 0.0
    %89 = vmatpush.msra.mxu0 0.0
    %90 = vmatpush.msra.mxu0 0.0
    %91 = vmatpush.msra.mxu0 0.0
    %92 = vmatpush.msra.mxu0 0.0
    %93 = vmatpush.msra.mxu0 0.0
    %94 = vmatpush.msra.mxu0 %v50
    %95 = vmatmul.f32.gmra.mxu0 %v42
    %v96 = vpop.f32.mrf.mxu0
    %v97 = vadd.f32 %v24, %v96
    %98 = vmatmul.f32.gmra.mxu0 %v45
    %v99 = vpop.f32.mrf.mxu0
    %v100 = vadd.f32 %v29, %v99
    %101 = vdwg.mxu0
    %102 = vmatpush.msra.mxu0 0.0
    %103 = vmatpush.msra.mxu0 0.0
    %104 = vmatpush.msra.mxu0 0.0
    %105 = vmatpush.msra.mxu0 0.0
    %106 = vmatpush.msra.mxu0 0.0
    %107 = vmatpush.msra.mxu0 0.0
    %108 = vmatpush.msra.mxu0 0.0
    %109 = vmatpush.msra.mxu0 0.0
    %110 = vmatpush.msra.mxu0 0.0
    %111 = vmatpush.msra.mxu0 0.0
    %112 = vmatpush.msra.mxu0 0.0
    %113 = vmatpush.msra.mxu0 0.0
    %114 = vmatpush.msra.mxu0 0.0
    %115 = vmatpush.msra.mxu0 0.0
    %116 = vmatpush.msra.mxu0 0.0
    %117 = vmatpush.msra.mxu0 %v52
    %118 = vmatmul.f32.gmra.mxu0 %v42
    %v119 = vpop.f32.mrf.mxu0
    %v120 = vadd.f32 %v24, %v119
    %121 = vmatmul.f32.gmra.mxu0 %v45
    %v122 = vpop.f32.mrf.mxu0
    %v123 = vadd.f32 %v29, %v122
    %124 = vdwg.mxu0
    %125 = vmatpush.msra.mxu0 0.0
    %126 = vmatpush.msra.mxu0 0.0
    %127 = vmatpush.msra.mxu0 0.0
    %128 = vmatpush.msra.mxu0 0.0
    %129 = vmatpush.msra.mxu0 0.0
    %130 = vmatpush.msra.mxu0 0.0
    %131 = vmatpush.msra.mxu0 0.0
    %132 = vmatpush.msra.mxu0 0.0
    %133 = vmatpush.msra.mxu0 0.0
    %134 = vmatpush.msra.mxu0 0.0
    %135 = vmatpush.msra.mxu0 0.0
    %136 = vmatpush.msra.mxu0 0.0
    %137 = vmatpush.msra.mxu0 0.0
    %138 = vmatpush.msra.mxu0 0.0
    %139 = vmatpush.msra.mxu0 0.0
    %140 = vmatpush.msra.mxu0 %v54
    %141 = vmatmul.f32.gmra.mxu0 %v42
    %v142 = vpop.f32.mrf.mxu0
    %v143 = vadd.f32 %v24, %v142
    %144 = vmatmul.f32.gmra.mxu0 %v45
    %v145 = vpop.f32.mrf.mxu0
    %v146 = vadd.f32 %v29, %v145
    %147 = vdwg.mxu0
    %148 = vmatpush.xpose.msra.mxu0 0.0
    %149 = vmatpush.xpose.msra.mxu0 0.0
    %150 = vmatpush.xpose.msra.mxu0 0.0
    %151 = vmatpush.xpose.msra.mxu0 0.0
    %152 = vmatpush.xpose.msra.mxu0 0.0
    %153 = vmatpush.xpose.msra.mxu0 0.0
    %154 = vmatpush.xpose.msra.mxu0 0.0
    %155 = vmatpush.xpose.msra.mxu0 0.0
    %156 = vmatpush.xpose.msra.mxu0 0.0
    %157 = vmatpush.xpose.msra.mxu0 0.0
    %158 = vmatpush.xpose.msra.mxu0 0.0
    %159 = vmatpush.xpose.msra.mxu0 0.0
    %160 = vmatpush.xpose.msra.mxu0 0.0
    %161 = vmatpush.xpose.msra.mxu0 0.0
    %162 = vmatpush.xpose.msra.mxu0 0.0
    %163 = vmatpush.xpose.msra.mxu0 %v74
    %164 = vmatmul.f32.gmra.mxu0 %v77
    %v165 = vpop.f32.mrf.mxu0
    %v166 = vadd.f32 0.0, %v165
    %167 = vdwg.mxu0
    %168 = vmatpush.xpose.msra.mxu0 0.0
    %169 = vmatpush.xpose.msra.mxu0 0.0
    %170 = vmatpush.xpose.msra.mxu0 0.0
    %171 = vmatpush.xpose.msra.mxu0 0.0
    %172 = vmatpush.xpose.msra.mxu0 0.0
    %173 = vmatpush.xpose.msra.mxu0 0.0
    %174 = vmatpush.xpose.msra.mxu0 0.0
    %175 = vmatpush.xpose.msra.mxu0 0.0
    %176 = vmatpush.xpose.msra.mxu0 0.0
    %177 = vmatpush.xpose.msra.mxu0 0.0
    %178 = vmatpush.xpose.msra.mxu0 0.0
    %179 = vmatpush.xpose.msra.mxu0 0.0
    %180 = vmatpush.xpose.msra.mxu0 0.0
    %181 = vmatpush.xpose.msra.mxu0 0.0
    %182 = vmatpush.xpose.msra.mxu0 0.0
    %183 = vmatpush.xpose.msra.mxu0 %v97
    %184 = vmatmul.f32.gmra.mxu0 %v100
    %v185 = vpop.f32.mrf.mxu0
    %v186 = vadd.f32 %v166, %v185
    %187 = vdwg.mxu0
    %vm188 = vcmask 60416
    %v189 = vsel %vm188, %v186, -inf
    %190 = vmax.xlane.f32.xlu0 %v189
    %v191 = vpop.xlane.xlu0 %190
    %v192 = vsub.f32 %v186, %v191
    %v193 = vmul.f32 %v192, 1.442695
    %v194 = vpow.pop %v193
    %v195 = vsel %vm188, %v194, 0.0
    %196 = vadd.xlane.f32.xlu0 %v195
    %v197 = vpop.xlane.xlu0 %196
    %v198 = vrcp.pop %v197
    %v199 = vmul.f32 %v197, %v198
    %v200 = vsub.f32 1.0, %v199
    %v201 = vmul.f32 %v198, %v200
    %v202 = vadd.f32 %v198, %v201
    %vm203 = vweird.f32 %v197
    %vm204 = vweird.f32 %v198
    %vm205 = vmor %vm203, %vm204
    %v206 = vsel %vm205, %v198, %v202
    %v207 = vand.u32 2147483647, %v197
    %vm208 = vcmp.eq.f32.partialorder %v207, 8.507059e+37
    %v209 = vand.u32 %v197, 2147483648
    %v210 = vor.u32 1.1754944e-38, %v209
    %v211 = vsel %vm208, %v210, %v206
    %v212 = vmul.f32 %v194, %v211
    %vm213 = vcmask 64512
    %v215 = vsel %vm213, %v212, 0
    %217 = vmatpush.msra.mxu0 0.0
    %218 = vmatpush.msra.mxu0 0.0
    %219 = vmatpush.msra.mxu0 0.0
    %220 = vmatpush.msra.mxu0 0.0
    %221 = vmatpush.msra.mxu0 0.0
    %222 = vmatpush.msra.mxu0 0.0
    %223 = vmatpush.msra.mxu0 0.0
    %224 = vmatpush.msra.mxu0 0.0
    %225 = vmatpush.msra.mxu0 0.0
    %226 = vmatpush.msra.mxu0 0.0
    %227 = vmatpush.msra.mxu0 0.0
    %228 = vmatpush.msra.mxu0 0.0
    %229 = vmatpush.msra.mxu0 0.0
    %230 = vmatpush.msra.mxu0 0.0
    %231 = vmatpush.msra.mxu0 0.0
    %232 = vmatpush.msra.mxu0 %v74
    %233 = vmatmul.f32.gmra.mxu0 %v215
    %v234 = vpop.f32.mrf.mxu0
    %v235 = vadd.f32 0.0, %v234
    %236 = vdwg.mxu0
    %237 = vmatpush.msra.mxu0 0.0
    %238 = vmatpush.msra.mxu0 0.0
    %239 = vmatpush.msra.mxu0 0.0
    %240 = vmatpush.msra.mxu0 0.0
    %241 = vmatpush.msra.mxu0 0.0
    %242 = vmatpush.msra.mxu0 0.0
    %243 = vmatpush.msra.mxu0 0.0
    %244 = vmatpush.msra.mxu0 0.0
    %245 = vmatpush.msra.mxu0 0.0
    %246 = vmatpush.msra.mxu0 0.0
    %247 = vmatpush.msra.mxu0 0.0
    %248 = vmatpush.msra.mxu0 0.0
    %249 = vmatpush.msra.mxu0 0.0
    %250 = vmatpush.msra.mxu0 0.0
    %251 = vmatpush.msra.mxu0 0.0
    %252 = vmatpush.msra.mxu0 %v97
    %253 = vmatmul.f32.gmra.mxu0 %v215
    %v254 = vpop.f32.mrf.mxu0
    %v255 = vadd.f32 0.0, %v254
    %256 = vdwg.mxu0
    %257 = vst [vmem:[#allocation1] ss:$2 sm:$0xff] %v15
    %v258 = vld.sshfl [vmem:[#allocation1] sm:$0xff pattern:$0x75316420]
    %v259 = vld.sshfl [vmem:[#allocation1 + $0x8] sm:$0xff pattern:$0x75316420]
    %v264 = vrot.slane %v235, 4
    %v265 = vrot.slane %v255, 4
    %v268 = vsel %vm47, %v258, %v264
    %v269 = vsel %vm47, %v259, %v265
    %270 = vst [vmem:[#allocation2] sm:$0xff] %v268
    %271 = vst [vmem:[#allocation2 + $0x8] sm:$0xff] %v269
    %272 = vmatpush.xpose.msra.mxu0 0.0
    %273 = vmatpush.xpose.msra.mxu0 0.0
    %274 = vmatpush.xpose.msra.mxu0 0.0
    %275 = vmatpush.xpose.msra.mxu0 0.0
    %276 = vmatpush.xpose.msra.mxu0 0.0
    %277 = vmatpush.xpose.msra.mxu0 0.0
    %278 = vmatpush.xpose.msra.mxu0 0.0
    %279 = vmatpush.xpose.msra.mxu0 0.0
    %280 = vmatpush.xpose.msra.mxu0 0.0
    %281 = vmatpush.xpose.msra.mxu0 0.0
    %282 = vmatpush.xpose.msra.mxu0 0.0
    %283 = vmatpush.xpose.msra.mxu0 0.0
    %284 = vmatpush.xpose.msra.mxu0 0.0
    %285 = vmatpush.xpose.msra.mxu0 0.0
    %286 = vmatpush.xpose.msra.mxu0 0.0
    %287 = vmatpush.xpose.msra.mxu0 %v120
    %288 = vmatmul.f32.gmra.mxu0 %v123
    %v289 = vpop.f32.mrf.mxu0
    %v290 = vadd.f32 0.0, %v289
    %291 = vdwg.mxu0
    %292 = vmatpush.xpose.msra.mxu0 0.0
    %293 = vmatpush.xpose.msra.mxu0 0.0
    %294 = vmatpush.xpose.msra.mxu0 0.0
    %295 = vmatpush.xpose.msra.mxu0 0.0
    %296 = vmatpush.xpose.msra.mxu0 0.0
    %297 = vmatpush.xpose.msra.mxu0 0.0
    %298 = vmatpush.xpose.msra.mxu0 0.0
    %299 = vmatpush.xpose.msra.mxu0 0.0
    %300 = vmatpush.xpose.msra.mxu0 0.0
    %301 = vmatpush.xpose.msra.mxu0 0.0
    %302 = vmatpush.xpose.msra.mxu0 0.0
    %303 = vmatpush.xpose.msra.mxu0 0.0
    %304 = vmatpush.xpose.msra.mxu0 0.0
    %305 = vmatpush.xpose.msra.mxu0 0.0
    %306 = vmatpush.xpose.msra.mxu0 0.0
    %307 = vmatpush.xpose.msra.mxu0 %v143
    %308 = vmatmul.f32.gmra.mxu0 %v146
    %v309 = vpop.f32.mrf.mxu0
    %v310 = vadd.f32 %v290, %v309
    %311 = vdwg.mxu0
    %v312 = vsel %vm188, %v310, -inf
    %313 = vmax.xlane.f32.xlu0 %v312
    %v314 = vpop.xlane.xlu0 %313
    %v315 = vsub.f32 %v310, %v314
    %v316 = vmul.f32 %v315, 1.442695
    %v317 = vpow.pop %v316
    %v318 = vsel %vm188, %v317, 0.0
    %319 = vadd.xlane.f32.xlu0 %v318
    %v320 = vpop.xlane.xlu0 %319
    %v321 = vrcp.pop %v320
    %v322 = vmul.f32 %v320, %v321
    %v323 = vsub.f32 1.0, %v322
    %v324 = vmul.f32 %v321, %v323
    %v325 = vadd.f32 %v321, %v324
    %vm326 = vweird.f32 %v320
    %vm327 = vweird.f32 %v321
    %vm328 = vmor %vm326, %vm327
    %v329 = vsel %vm328, %v321, %v325
    %v330 = vand.u32 2147483647, %v320
    %vm331 = vcmp.eq.f32.partialorder %v330, 8.507059e+37
    %v332 = vand.u32 %v320, 2147483648
    %v333 = vor.u32 1.1754944e-38, %v332
    %v334 = vsel %vm331, %v333, %v329
    %v335 = vmul.f32 %v317, %v334
    %v337 = vsel %vm213, %v335, 0
    %339 = vmatpush.msra.mxu0 0.0
    %340 = vmatpush.msra.mxu0 0.0
    %341 = vmatpush.msra.mxu0 0.0
    %342 = vmatpush.msra.mxu0 0.0
    %343 = vmatpush.msra.mxu0 0.0
    %344 = vmatpush.msra.mxu0 0.0
    %345 = vmatpush.msra.mxu0 0.0
    %346 = vmatpush.msra.mxu0 0.0
    %347 = vmatpush.msra.mxu0 0.0
    %348 = vmatpush.msra.mxu0 0.0
    %349 = vmatpush.msra.mxu0 0.0
    %350 = vmatpush.msra.mxu0 0.0
    %351 = vmatpush.msra.mxu0 0.0
    %352 = vmatpush.msra.mxu0 0.0
    %353 = vmatpush.msra.mxu0 0.0
    %354 = vmatpush.msra.mxu0 %v120
    %355 = vmatmul.f32.gmra.mxu0 %v337
    %v356 = vpop.f32.mrf.mxu0
    %v357 = vadd.f32 0.0, %v356
    %358 = vdwg.mxu0
    %359 = vmatpush.msra.mxu0 0.0
    %360 = vmatpush.msra.mxu0 0.0
    %361 = vmatpush.msra.mxu0 0.0
    %362 = vmatpush.msra.mxu0 0.0
    %363 = vmatpush.msra.mxu0 0.0
    %364 = vmatpush.msra.mxu0 0.0
    %365 = vmatpush.msra.mxu0 0.0
    %366 = vmatpush.msra.mxu0 0.0
    %367 = vmatpush.msra.mxu0 0.0
    %368 = vmatpush.msra.mxu0 0.0
    %369 = vmatpush.msra.mxu0 0.0
    %370 = vmatpush.msra.mxu0 0.0
    %371 = vmatpush.msra.mxu0 0.0
    %372 = vmatpush.msra.mxu0 0.0
    %373 = vmatpush.msra.mxu0 0.0
    %374 = vmatpush.msra.mxu0 %v143
    %375 = vmatmul.f32.gmra.mxu0 %v337
    %v376 = vpop.f32.mrf.mxu0
    %v377 = vadd.f32 0.0, %v376
    %378 = vdwg.mxu0
    %379 = vst [vmem:[#allocation1] ss:$2 sm:$0xff] %v16
    %v380 = vld.sshfl [vmem:[#allocation1] sm:$0xff pattern:$0x75316420]
    %v381 = vld.sshfl [vmem:[#allocation1 + $0x8] sm:$0xff pattern:$0x75316420]
    %v386 = vrot.slane %v357, 4
    %v387 = vrot.slane %v377, 4
    %v390 = vsel %vm47, %v380, %v386
    %v391 = vsel %vm47, %v381, %v387
    %s392 = scalar_lea.vmem [#allocation2], 16
    %393 = vst [vmem:[%s392] sm:$0xff] %v390
    %394 = vst [vmem:[%s392 + $0x8] sm:$0xff] %v391
    // Predicated region
    $region14: #{tpu_custom_call.1} parent=1 // pred_check
      _
    $region15: #{tpu_custom_call.1} parent=1 // pred_check_branch
      %396 = sbr.rel (0) target = $region17
    $region16: #{tpu_custom_call.1} parent=1 // pred_region
      %398 = vsyncadd [#allocation3], 0
      %s399 = sshll.u32 [#allocation2], 4
      %s400 = int_to_ptr.vmem [resolvable:$true] %s399
      %s401 = sshll.u32 %s3, 4
      %s402 = int_to_ptr.hbm [resolvable:$true] %s401
      %407 = dma.vmem_to_hbm [thread:$0]  %s400, 512, %s402, [#allocation3], 256, 256, 16
    $region17: #{tpu_custom_call.1} parent=1 // pred_fallthru
      _
    // Predicated region
    $region18: #{tpu_custom_call.1} parent=1 // pred_check
      _
    $region19: #{tpu_custom_call.1} parent=1 // pred_check_branch
      %409 = sbr.rel (0) target = $region21
    $region20: #{tpu_custom_call.1} parent=1 // pred_region
      %411 = dma.done [#allocation3], 512
    $region21: #{tpu_custom_call.1} parent=1 // pred_fallthru
      _
    %412 = vsyncpa [#allocation3], 1

</llo_original>
